<compile_context>
chip_gen: v5e
topology: v5e:2x2
jax: 0.10.0
libtpu: 0.0.40
codegen_flags: <defaults>
</compile_context>

<pallas_src>
import functools

import jax
import jax.numpy as jnp
from jax import lax
from jax.experimental import pallas as pl
from jax.experimental.pallas import tpu as pltpu


# ---------------------------------------------------------------------------
# Pass 1: per-head K / V projection (computed once per forward).
# ---------------------------------------------------------------------------
def _kv_proj_kernel(ctx_ref, wk_ref, wv_ref, k_ref, v_ref):
    """One (batch, k-tile, head) grid step.

    ctx_ref: (1, tk, Dc)    context row tile (compute dtype); the block index
                            only changes with (b, kp), so it is fetched once
                            and reused across the inner head axis.
    wk_ref:  (H, Dc, Dh)    resident K projection weights
    wv_ref:  (H, Dc, Dh)    resident V projection weights
    k_ref:   (1, 1, tk, Dh) output K tile for head h
    v_ref:   (1, 1, tk, Dh) output V tile for head h
    """
    h = pl.program_id(2)
    ctx = ctx_ref[0]
    k_ref[0, 0] = jnp.dot(ctx, wk_ref[h],
                          preferred_element_type=jnp.float32).astype(k_ref.dtype)
    v_ref[0, 0] = jnp.dot(ctx, wv_ref[h],
                          preferred_element_type=jnp.float32).astype(v_ref.dtype)


# ---------------------------------------------------------------------------
# Pass 2: flash-style attention + output projection.
# ---------------------------------------------------------------------------
def _attn_kernel(q_ref, k_ref, v_ref, wq_ref, wo_ref, bo_ref, o_ref,
                 q_scr, m_scr, l_scr, acc_h, acc_out, *, scale):
    """One (batch, q-tile, head, k-tile) grid step.

    q_ref:   (1, tq, Dq)     query row tile (compute dtype)
    k_ref:   (1, 1, tk, Dh)  precomputed K tile for head h
    v_ref:   (1, 1, tk, Dh)  precomputed V tile for head h
    wq_ref:  (H, Dq, Dh)     resident per-head Q projection
    wo_ref:  (H, Dh, Dq)     resident per-head slice of to_out weight
    bo_ref:  (1, Dq)         to_out bias (f32)
    o_ref:   (1, tq, Dq)     output row tile

    scratch:
      q_scr   (tq, Dh)  projected + scaled q (compute dtype)
      m_scr   (tq, 1)   online-softmax running max (f32)
      l_scr   (tq, 1)   online-softmax running denominator (f32)
      acc_h   (tq, Dh)  per-head attention accumulator (f32)
      acc_out (tq, Dq)  head-merged output accumulator (f32)
    """
    h = pl.program_id(2)
    ki = pl.program_id(3)
    nh = pl.num_programs(2)
    nk = pl.num_programs(3)

    # Fresh head-merged accumulator for every (batch, q-tile).
    @pl.when(jnp.logical_and(h == 0, ki == 0))
    def _():
        acc_out[...] = jnp.zeros_like(acc_out)

    # New head: project q once (reused across all k tiles), reset softmax state.
    @pl.when(ki == 0)
    def _():
        qp = jnp.dot(q_ref[0], wq_ref[h], preferred_element_type=jnp.float32)
        q_scr[...] = (qp * scale).astype(q_scr.dtype)
        m_scr[...] = jnp.full_like(m_scr, -jnp.inf)
        l_scr[...] = jnp.zeros_like(l_scr)
        acc_h[...] = jnp.zeros_like(acc_h)

    k = k_ref[0, 0]                     # (tk, Dh) compute dtype
    v = v_ref[0, 0]                     # (tk, Dh) compute dtype

    # Scores: (tq, Dh) x (tk, Dh)^T -> (tq, tk), f32 accumulation.
    s = lax.dot_general(q_scr[...], k, (((1,), (1,)), ((), ())),
                        preferred_element_type=jnp.float32)

    # Online softmax (statistics in f32).
    m_prev = m_scr[...]
    m_new = jnp.maximum(m_prev, jnp.max(s, axis=-1, keepdims=True))
    alpha = jnp.exp(m_prev - m_new)
    p = jnp.exp(s - m_new)
    l_scr[...] = alpha * l_scr[...] + jnp.sum(p, axis=-1, keepdims=True)
    acc_h[...] = alpha * acc_h[...] + jnp.dot(p.astype(v.dtype), v,
                                              preferred_element_type=jnp.float32)
    m_scr[...] = m_new

    # Last k tile of this head: normalize (EUP reciprocal) and fold the head
    # into the output-projection accumulator (contracts over Dh with Wo[h]).
    @pl.when(ki == nk - 1)
    def _():
        o_h = acc_h[...] * pl.reciprocal(l_scr[...], approx=True)
        acc_out[...] += jnp.dot(o_h.astype(v.dtype), wo_ref[h],
                                preferred_element_type=jnp.float32)

    # Last head + last k tile: add bias once, emit the lane-dense output tile.
    @pl.when(jnp.logical_and(h == nh - 1, ki == nk - 1))
    def _():
        o_ref[0] = (acc_out[...] + bo_ref[...]).astype(o_ref.dtype)


# ---------------------------------------------------------------------------
# Wrapper utilities.
# ---------------------------------------------------------------------------
def _pick_tile(n, cap, multiple):
    """Largest divisor of n that is <= cap and a multiple of `multiple`;
    falls back to multiples of 8, then to the full dimension."""
    if n <= cap:
        return n
    start = cap - cap % multiple
    for t in range(start, multiple - 1, -multiple):
        if n % t == 0:
            return t
    if multiple > 8:
        start = cap - cap % 8
        for t in range(start, 7, -8):
            if n % t == 0:
                return t
    # TODO(synk): pad + (-inf) key masking instead of a full-length tile.
    return n


def _default_vmem_limit():
    """Generation-aware VMEM budget: 64 MiB on 128-MiB parts (v5e/v6e),
    48 MiB on v7x (64 MiB physical per TensorCore)."""
    try:
        cap = int(pltpu.get_tpu_info().vmem_capacity_bytes)
    except Exception:
        return 48 * 1024 * 1024
    if cap >= 100 * 1024 * 1024:
        return 64 * 1024 * 1024
    return 48 * 1024 * 1024


def prepare_cross_attention_params(wq, wkv, wo, bo, *, num_heads,
                                    compute_dtype=jnp.bfloat16):
    """Hoisted per-parameter prep (head split, transpose, dtype cast).

    wq:  (Dq, inner)      to_q weight, pre-transposed to (in, out)
    wkv: (Dc, 2 * inner)  to_kv weight, pre-transposed; [:, :inner]=K, [:, inner:]=V
    wo:  (inner, Dq)      to_out weight, pre-transposed
    bo:  (Dq,)            to_out bias
    """
    wq = jnp.asarray(wq)
    wkv = jnp.asarray(wkv)
    wo = jnp.asarray(wo)
    bo = jnp.asarray(bo)

    Dq, inner = wq.shape
    Dc = wkv.shape[0]
    assert wkv.shape == (Dc, 2 * inner)
    assert wo.shape == (inner, Dq)
    assert bo.shape == (Dq,)
    assert inner % num_heads == 0
    H = num_heads
    Dh = inner // H

    wk = wkv[:, :inner]
    wv = wkv[:, inner:]
    return dict(
        wq_h=wq.reshape(Dq, H, Dh).transpose(1, 0, 2).astype(compute_dtype),   # (H, Dq, Dh)
        wk_h=wk.reshape(Dc, H, Dh).transpose(1, 0, 2).astype(compute_dtype),   # (H, Dc, Dh)
        wv_h=wv.reshape(Dc, H, Dh).transpose(1, 0, 2).astype(compute_dtype),   # (H, Dc, Dh)
        wo_h=wo.reshape(H, Dh, Dq).astype(compute_dtype),                      # (H, Dh, Dq)
        bo=bo.reshape(1, Dq).astype(jnp.float32),
        num_heads=H, head_dim=Dh, query_dim=Dq, context_dim=Dc,
        inner_dim=inner, compute_dtype=compute_dtype,
    )


def cross_attention(query, context, params, *, tq=None, tk=None,
                    vmem_limit_bytes=None):
    """query: (B, Sq, Dq), context: (B, Sk, Dc) -> (B, Sq, Dq)."""
    B, Sq, Dq = query.shape
    Bc, Sk, Dc = context.shape
    assert B == Bc
    assert Dq == params["query_dim"] and Dc == params["context_dim"]
    H = params["num_heads"]
    Dh = params["head_dim"]
    cd = params["compute_dtype"]
    scale = float(Dh) ** -0.5

    if tk is None:
        tk = _pick_tile(Sk, 512, 128)
    if tq is None:
        cap_q = 512
        if B == 1 and Sq > 8:
            # Keep >= 2 q tiles so both v7x TensorCores get parallel work.
            cap_q = min(cap_q, max(8, (Sq // 2) // 8 * 8))
        tq = _pick_tile(Sq, cap_q, 8)
    assert Sq % tq == 0 and Sk % tk == 0

    if vmem_limit_bytes is None:
        vmem_limit_bytes = _default_vmem_limit()

    q_in = query.astype(cd)
    c_in = context.astype(cd)

    # ---- Pass 1: K / V projection hoisted out of the attention loops. ----
    k_all, v_all = pl.pallas_call(
        _kv_proj_kernel,
        out_shape=(jax.ShapeDtypeStruct((B, H, Sk, Dh), cd),
                   jax.ShapeDtypeStruct((B, H, Sk, Dh), cd)),
        grid=(B, Sk // tk, H),
        in_specs=[
            pl.BlockSpec((1, tk, Dc), lambda b, kp, h: (b, kp, 0)),   # context tile
            pl.BlockSpec((H, Dc, Dh), lambda b, kp, h: (0, 0, 0)),    # Wk (resident)
            pl.BlockSpec((H, Dc, Dh), lambda b, kp, h: (0, 0, 0)),    # Wv (resident)
        ],
        out_specs=(
            pl.BlockSpec((1, 1, tk, Dh), lambda b, kp, h: (b, h, kp, 0)),
            pl.BlockSpec((1, 1, tk, Dh), lambda b, kp, h: (b, h, kp, 0)),
        ),
        compiler_params=pltpu.CompilerParams(
            dimension_semantics=("parallel", "parallel", "arbitrary"),
            vmem_limit_bytes=vmem_limit_bytes),
    )(c_in, params["wk_h"], params["wv_h"])

    # ---- Pass 2: flash-style attention + output projection. ----
    kernel = functools.partial(_attn_kernel, scale=scale)
    out = pl.pallas_call(
        kernel,
        out_shape=jax.ShapeDtypeStruct((B, Sq, Dq), query.dtype),
        grid=(B, Sq // tq, H, Sk // tk),
        in_specs=[
            pl.BlockSpec((1, tq, Dq), lambda b, qi, h, ki: (b, qi, 0)),       # query tile
            pl.BlockSpec((1, 1, tk, Dh), lambda b, qi, h, ki: (b, h, ki, 0)), # K tile
            pl.BlockSpec((1, 1, tk, Dh), lambda b, qi, h, ki: (b, h, ki, 0)), # V tile
            pl.BlockSpec((H, Dq, Dh), lambda b, qi, h, ki: (0, 0, 0)),        # Wq (resident)
            pl.BlockSpec((H, Dh, Dq), lambda b, qi, h, ki: (0, 0, 0)),        # Wo (resident)
            pl.BlockSpec((1, Dq), lambda b, qi, h, ki: (0, 0)),               # bias (resident)
        ],
        out_specs=pl.BlockSpec((1, tq, Dq), lambda b, qi, h, ki: (b, qi, 0)),
        scratch_shapes=[
            pltpu.VMEM((tq, Dh), cd),            # projected q
            pltpu.VMEM((tq, 1), jnp.float32),    # running max
            pltpu.VMEM((tq, 1), jnp.float32),    # running denominator
            pltpu.VMEM((tq, Dh), jnp.float32),   # per-head accumulator
            pltpu.VMEM((tq, Dq), jnp.float32),   # head-merged accumulator
        ],
        compiler_params=pltpu.CompilerParams(
            dimension_semantics=("parallel", "parallel", "arbitrary", "arbitrary"),
            vmem_limit_bytes=vmem_limit_bytes),
    )(q_in, k_all, v_all, params["wq_h"], params["wo_h"], params["bo"])

    return out


# ---------------------------------------------------------------------------
# Reference + test harness.
# ---------------------------------------------------------------------------
def _init_weights(key, query_dim, context_dim, inner_dim):
    """Deterministic synthetic params mimicking PyTorch nn.Linear defaults,
    stored pre-transposed as (in, out)."""
    k1, k2, k3, k4 = jax.random.split(key, 4)
    bq = 1.0 / (query_dim ** 0.5)
    wq = jax.random.uniform(k1, (query_dim, inner_dim), jnp.float32, -bq, bq)
    bc = 1.0 / (context_dim ** 0.5)
    wkv = jax.random.uniform(k2, (context_dim, 2 * inner_dim), jnp.float32, -bc, bc)
    bi = 1.0 / (inner_dim ** 0.5)
    wo = jax.random.uniform(k3, (inner_dim, query_dim), jnp.float32, -bi, bi)
    bo = jax.random.uniform(k4, (query_dim,), jnp.float32, -bi, bi)
    return wq, wkv, wo, bo


def _reference(query, context, wq, wkv, wo, bo, num_heads):
    """Pure-JAX f32 reference matching the PyTorch forward."""
    B, Sq, _ = query.shape
    inner = wq.shape[1]
    H = num_heads
    Dh = inner // H
    scale = float(Dh) ** -0.5

    q = query @ wq
    kv = context @ wkv
    k, v = kv[..., :inner], kv[..., inner:]

    def split(t):
        b, s, _ = t.shape
        return t.reshape(b, s, H, Dh).transpose(0, 2, 1, 3)

    qh, kh, vh = split(q), split(k), split(v)
    sim = jnp.einsum('bhid,bhjd->bhij', qh, kh) * scale
    attn = jax.nn.softmax(sim, axis=-1)
    out = jnp.einsum('bhij,bhjd->bhid', attn, vh)
    out = out.transpose(0, 2, 1, 3).reshape(B, Sq, inner)
    return out @ wo + bo


def _run_case(key, *, B, Sq, Sk, query_dim, context_dim, inner_dim, num_heads,
              tq=None, tk=None):
    kq, kc, kp = jax.random.split(key, 3)
    query = jax.random.normal(kq, (B, Sq, query_dim), jnp.float32)
    context = jax.random.normal(kc, (B, Sk, context_dim), jnp.float32)
    wq, wkv, wo, bo = _init_weights(kp, query_dim, context_dim, inner_dim)
    ref = _reference(query, context, wq, wkv, wo, bo, num_heads)

    # f32 compute path: tight numerical check against the pure-JAX reference
    # (tolerance leaves room for the approx EUP reciprocal).
    p32 = prepare_cross_attention_params(wq, wkv, wo, bo, num_heads=num_heads,
                                         compute_dtype=jnp.float32)
    out32 = jax.block_until_ready(cross_attention(query, context, p32, tq=tq, tk=tk))
    assert out32.shape == (B, Sq, query_dim)
    assert jnp.allclose(out32, ref, atol=3e-3, rtol=3e-3), (
        float(jnp.max(jnp.abs(out32 - ref))))

    # bf16 compute path (default, MXU-friendly): looser tolerance.
    pbf = prepare_cross_attention_params(wq, wkv, wo, bo, num_heads=num_heads)
    outbf = jax.block_until_ready(cross_attention(query, context, pbf, tq=tq, tk=tk))
    assert outbf.shape == (B, Sq, query_dim)
    assert jnp.allclose(outbf, ref, atol=6e-2, rtol=6e-2), (
        float(jnp.max(jnp.abs(outbf - ref))))


if __name__ == "__main__":
    key = jax.random.PRNGKey(0)
    k1, k2 = jax.random.split(key)

    # Small single-tile case (matches the module's implied small shapes).
    _run_case(k1, B=2, Sq=8, Sk=16, query_dim=32, context_dim=48,
              inner_dim=32, num_heads=2)

    # Multi-tile case: exercises flash accumulation across q/k tiles and
    # heads, plus the B==1 two-q-tile split (v7x core balance).
    _run_case(k2, B=1, Sq=16, Sk=256, query_dim=64, context_dim=64,
              inner_dim=64, num_heads=4, tq=8, tk=128)

    print("KERNEL_OK")
</pallas_src>

<mosaic_0001>
module attributes {stable_mosaic.version = 11 : i64} {
  func.func @_kv_proj_kernel(%arg0: i32, %arg1: i32, %arg2: i32, %arg3: memref<1x16x48xf32, #tpu.memory_space<vmem>>, %arg4: memref<2x48x16xf32, #tpu.memory_space<vmem>>, %arg5: memref<2x48x16xf32, #tpu.memory_space<vmem>>, %arg6: memref<1x1x16x16xf32, #tpu.memory_space<vmem>>, %arg7: memref<1x1x16x16xf32, #tpu.memory_space<vmem>>) attributes {dimension_semantics = [#tpu.dimension_semantics<parallel>, #tpu.dimension_semantics<parallel>, #tpu.dimension_semantics<arbitrary>], iteration_bounds = array<i64: 2, 1, 2>, scalar_prefetch = 0 : i64, scratch_operands = 0 : i64, tpu.core_type = #tpu.core_type<tc>, window_params = [{transform_indices = @transform_0, window_bounds = array<i64: 1, 16, 48>}, {pipeline_mode = #tpu.pipeline_mode<synchronous>, transform_indices = @transform_1, window_bounds = array<i64: 2, 48, 16>}, {pipeline_mode = #tpu.pipeline_mode<synchronous>, transform_indices = @transform_2, window_bounds = array<i64: 2, 48, 16>}, {transform_indices = @transform_3, window_bounds = array<i64: 1, 1, 16, 16>}, {transform_indices = @transform_4, window_bounds = array<i64: 1, 1, 16, 16>}]} {
    %c0 = arith.constant 0 : index
    %c0_0 = arith.constant 0 : index
    %c0_1 = arith.constant 0 : index
    %0 = vector.load %arg3[%c0, %c0_0, %c0_1] : memref<1x16x48xf32, #tpu.memory_space<vmem>>, vector<1x16x48xf32>
    %1 = vector.shape_cast %0 : vector<1x16x48xf32> to vector<16x48xf32>
    %2 = arith.index_cast %arg2 : i32 to index
    %c0_2 = arith.constant 0 : index
    %c0_3 = arith.constant 0 : index
    %3 = vector.load %arg4[%2, %c0_2, %c0_3] : memref<2x48x16xf32, #tpu.memory_space<vmem>>, vector<1x48x16xf32>
    %4 = vector.shape_cast %3 : vector<1x48x16xf32> to vector<48x16xf32>
    %cst = arith.constant dense<0.000000e+00> : vector<16x16xf32>
    %5 = tpu.matmul %1, %4, %cst {dimension_numbers = #tpu.dot_dimension_numbers<[1], [0], [0], [1], [0, 0, 1, 1], [], []>} : vector<16x48xf32>, vector<48x16xf32>, vector<16x16xf32> -> vector<16x16xf32>
    %c0_4 = arith.constant 0 : index
    %c0_5 = arith.constant 0 : index
    %c0_6 = arith.constant 0 : index
    %c0_7 = arith.constant 0 : index
    %6 = vector.load %arg6[%c0_4, %c0_5, %c0_6, %c0_7] : memref<1x1x16x16xf32, #tpu.memory_space<vmem>>, vector<1x1x16x16xf32>
    %7 = vector.shape_cast %6 : vector<1x1x16x16xf32> to vector<16x16xf32>
    %8 = vector.shape_cast %5 : vector<16x16xf32> to vector<1x1x16x16xf32>
    tpu.vector_store %arg6[%c0_4, %c0_5, %c0_6, %c0_7], %8 {strides = array<i32>} : memref<1x1x16x16xf32, #tpu.memory_space<vmem>>, vector<1x1x16x16xf32>,
    %9 = arith.index_cast %arg2 : i32 to index
    %c0_8 = arith.constant 0 : index
    %c0_9 = arith.constant 0 : index
    %10 = vector.load %arg5[%9, %c0_8, %c0_9] : memref<2x48x16xf32, #tpu.memory_space<vmem>>, vector<1x48x16xf32>
    %11 = vector.shape_cast %10 : vector<1x48x16xf32> to vector<48x16xf32>
    %cst_10 = arith.constant dense<0.000000e+00> : vector<16x16xf32>
    %12 = tpu.matmul %1, %11, %cst_10 {dimension_numbers = #tpu.dot_dimension_numbers<[1], [0], [0], [1], [0, 0, 1, 1], [], []>} : vector<16x48xf32>, vector<48x16xf32>, vector<16x16xf32> -> vector<16x16xf32>
    %c0_11 = arith.constant 0 : index
    %c0_12 = arith.constant 0 : index
    %c0_13 = arith.constant 0 : index
    %c0_14 = arith.constant 0 : index
    %13 = vector.load %arg7[%c0_11, %c0_12, %c0_13, %c0_14] : memref<1x1x16x16xf32, #tpu.memory_space<vmem>>, vector<1x1x16x16xf32>
    %14 = vector.shape_cast %13 : vector<1x1x16x16xf32> to vector<16x16xf32>
    %15 = vector.shape_cast %12 : vector<16x16xf32> to vector<1x1x16x16xf32>
    tpu.vector_store %arg7[%c0_11, %c0_12, %c0_13, %c0_14], %15 {strides = array<i32>} : memref<1x1x16x16xf32, #tpu.memory_space<vmem>>, vector<1x1x16x16xf32>,
    return
  }
  func.func @transform_0(%arg0: i32, %arg1: i32, %arg2: i32) -> (i32, i32, i32) {
    %c0_i32 = arith.constant 0 : i32
    %c0_i32_0 = arith.constant 0 : i32
    return %arg0, %arg1, %c0_i32 : i32, i32, i32
  }
  func.func @transform_1(%arg0: i32, %arg1: i32, %arg2: i32) -> (i32, i32, i32) {
    %c0_i32 = arith.constant 0 : i32
    %c0_i32_0 = arith.constant 0 : i32
    %c0_i32_1 = arith.constant 0 : i32
    %c0_i32_2 = arith.constant 0 : i32
    return %c0_i32, %c0_i32_0, %c0_i32_1 : i32, i32, i32
  }
  func.func @transform_2(%arg0: i32, %arg1: i32, %arg2: i32) -> (i32, i32, i32) {
    %c0_i32 = arith.constant 0 : i32
    %c0_i32_0 = arith.constant 0 : i32
    %c0_i32_1 = arith.constant 0 : i32
    %c0_i32_2 = arith.constant 0 : i32
    return %c0_i32, %c0_i32_0, %c0_i32_1 : i32, i32, i32
  }
  func.func @transform_3(%arg0: i32, %arg1: i32, %arg2: i32) -> (i32, i32, i32, i32) {
    %c0_i32 = arith.constant 0 : i32
    %c0_i32_0 = arith.constant 0 : i32
    return %arg0, %arg2, %arg1, %c0_i32 : i32, i32, i32, i32
  }
  func.func @transform_4(%arg0: i32, %arg1: i32, %arg2: i32) -> (i32, i32, i32, i32) {
    %c0_i32 = arith.constant 0 : i32
    %c0_i32_0 = arith.constant 0 : i32
    return %arg0, %arg2, %arg1, %c0_i32 : i32, i32, i32, i32
  }
}

</mosaic_0001>

<llo_original>
// kernel: tpu_custom_call.1
$region0: #{tpu_custom_call.1}
  #allocation0 [shape = 'u32[]', space=smem, size = 0x4, offset = 0x4, fixed_abs, tag = 'smem constant byte address 0x4 - core index']
  #allocation1 [shape = 'u32[72,128]{1,0:T(1,128)}', space=vmem, size = 0x9000, scoped, tag = 'internal scratch']
  %s0 = inlined_call_operand.vmem [shape: f32[2,16,48], index: 0, kind: input, shape index: {}]
  %s1 = inlined_call_operand.vmem [shape: f32[2,48,16], index: 1, kind: input, shape index: {}]
  %s2 = inlined_call_operand.vmem [shape: f32[2,48,16], index: 2, kind: input, shape index: {}]
  %s3 = inlined_call_operand.hbm [shape: f32[2,2,16,16], index: 3, kind: output, shape index: {0}]
  %s4 = inlined_call_operand.hbm [shape: f32[2,2,16,16], index: 4, kind: output, shape index: {1}]
  %5 = xla_tuple %s3, %s4
  %s6 = sld [smem:[#allocation0]]
  $region53: #{tpu_custom_call.1} parent=0
    _
  %s8 = ssub.s32 1, %s6
  %s9 = scalar_select 0, %s8, %s6
  $region1: #{tpu_custom_call.1} parent=0
    #allocation2 [shape = 'u8[16384]{0}', space=vmem, size = 0x4000, scoped, tag = 'output window, operand 0']
    #allocation3 [shape = 's32[2]{0}', space=sflag, size = 0x8, scoped, tag = 'scoped memory for tpu_custom_call.1']
    #allocation4 [shape = 'u8[16384]{0}', space=vmem, size = 0x4000, scoped, tag = 'output window, operand 1']
    #allocation5 [shape = 's32[2]{0}', space=sflag, size = 0x8, scoped, tag = 'scoped memory for tpu_custom_call.1']
    %10 = vsyncpa [#allocation3], 0
    %s11 = scalar_lea.sflag [#allocation3], 1
    %12 = vsyncpa %s11, 0
    %13 = vsyncpa [#allocation5], 0
    %s14 = scalar_lea.sflag [#allocation5], 1
    %15 = vsyncpa %s14, 0
    loop: start=0, step=1, limit=6
    $region2: #{tpu_custom_call.1} parent=1 // loop_pre_header
      _
    $region3: #{tpu_custom_call.1} parent=1 // loop_header
      %s17 = sphi 0, %s21
      %p18 = scmp.ge.s32.totalorder %s17, 6
      %s24 = sphi 0, %s43
      %s25 = sphi 0, %s39
      %s26 = sphi 0, %s35
      %s27 = sphi 0, %s24
      %s28 = sphi 0, %s25
      %s29 = sphi 0, %s26
      %s30 = sphi 0, %s27
      %s31 = sphi 0, %s28
      %s32 = sphi 0, %s29
      %s48 = sphi 0, %s50
      %s51 = sphi 0, %s48
      %s52 = sphi 0, %s51
      %s68 = sphi 0, %s52
      %s72 = sphi 0, %s72
      %s74 = sphi 0, %s72
      %s75 = sphi 0, %s74
      %s89 = sphi 0, %s75
      %s93 = sphi 0, %s93
      %s95 = sphi 0, %s93
      %s96 = sphi 0, %s95
      %s110 = sphi 0, %s96
      %s120 = sphi 0, %s122
      %s123 = sphi 0, %s120
      %s124 = sphi 0, %s123
      %s140 = sphi 0, %s124
      %s150 = sphi 0, %s152
      %s153 = sphi 0, %s150
      %s154 = sphi 0, %s153
      %s170 = sphi 0, %s154
    $region4: #{tpu_custom_call.1} parent=1 // loop_header_branch
      %20 = sbr.rel (%p18) target = $region8
    $region5: #{tpu_custom_call.1} parent=1 // loop_body
      %s22 = ssub.s32 %s17, 1
      %s23 = ssub.s32 %s17, 2
      %s33 = sadd.s32 1, %s26
      %p34 = scmp.ge.s32.totalorder %s33, 2
      %s35 = scalar_select %p34, 0, %s33
      %s36 = sadd.s32 1, %s25
      %s37 = scalar_select %p34, %s36, %s25
      %p38 = scmp.ge.s32.totalorder %s37, 1
      %s39 = scalar_select %p38, 0, %s37
      %s40 = sadd.s32 1, %s24
      %s41 = scalar_select %p38, %s40, %s24
      %p42 = scmp.ge.s32.totalorder %s41, 2
      %s43 = scalar_select %p42, 0, %s41
      %s44 = ssub.s32 %s24, %s43
      %s45 = ssub.s32 %s25, %s39
      %s46 = sor.u32 %s44, %s45
      %p47 = scmp.eq.s32.totalorder %s46, 0
      %s49 = sadd.s32 %s48, 1
      %s50 = scalar_select %p47, %s48, %s49
      %p53 = pneg %p47
      %p54 = scmp.eq.s32.totalorder %s17, 3
      %p55 = por %p53, %p54
      %p56 = scmp.ne.s32.totalorder %s48, %s51
      %p57 = scmp.eq.s32.totalorder %s17, 0
      %p58 = por %p56, %p57
      %p59 = scmp.ne.s32.totalorder %s48, %s51
      %p60 = scmp.eq.s32.totalorder %s22, 3
      %p61 = por %p59, %p60
      %p62 = scmp.ne.s32.totalorder %s51, %s52
      %p63 = scmp.eq.s32.totalorder %s22, 0
      %p64 = por %p62, %p63
      %p65 = scmp.ne.s32.totalorder %s51, %s52
      %p66 = scmp.eq.s32.totalorder %s23, 3
      %p67 = por %p65, %p66
      %p69 = scmp.ne.s32.totalorder %s52, %s68
      %p70 = scmp.eq.s32.totalorder %s23, 0
      %p71 = por %p69, %p70
      %s73 = sadd.s32 %s72, 1
      %p76 = scmp.eq.s32.totalorder %s17, 3
      %p77 = scmp.ne.s32.totalorder %s72, %s74
      %p78 = scmp.eq.s32.totalorder %s17, 0
      %p79 = por %p77, %p78
      %p80 = scmp.ne.s32.totalorder %s72, %s74
      %p81 = scmp.eq.s32.totalorder %s22, 3
      %p82 = por %p80, %p81
      %p83 = scmp.ne.s32.totalorder %s74, %s75
      %p84 = scmp.eq.s32.totalorder %s22, 0
      %p85 = por %p83, %p84
      %p86 = scmp.ne.s32.totalorder %s74, %s75
      %p87 = scmp.eq.s32.totalorder %s23, 3
      %p88 = por %p86, %p87
      %p90 = scmp.ne.s32.totalorder %s75, %s89
      %p91 = scmp.eq.s32.totalorder %s23, 0
      %p92 = por %p90, %p91
      %s94 = sadd.s32 %s93, 1
      %p97 = scmp.eq.s32.totalorder %s17, 3
      %p98 = scmp.ne.s32.totalorder %s93, %s95
      %p99 = scmp.eq.s32.totalorder %s17, 0
      %p100 = por %p98, %p99
      %p101 = scmp.ne.s32.totalorder %s93, %s95
      %p102 = scmp.eq.s32.totalorder %s22, 3
      %p103 = por %p101, %p102
      %p104 = scmp.ne.s32.totalorder %s95, %s96
      %p105 = scmp.eq.s32.totalorder %s22, 0
      %p106 = por %p104, %p105
      %p107 = scmp.ne.s32.totalorder %s95, %s96
      %p108 = scmp.eq.s32.totalorder %s23, 3
      %p109 = por %p107, %p108
      %p111 = scmp.ne.s32.totalorder %s96, %s110
      %p112 = scmp.eq.s32.totalorder %s23, 0
      %p113 = por %p111, %p112
      %s114 = ssub.s32 %s24, %s43
      %s115 = ssub.s32 %s26, %s35
      %s116 = sor.u32 %s114, %s115
      %s117 = ssub.s32 %s25, %s39
      %s118 = sor.u32 %s116, %s117
      %p119 = scmp.eq.s32.totalorder %s118, 0
      %s121 = sadd.s32 %s120, 1
      %s122 = scalar_select %p119, %s120, %s121
      %p125 = pneg %p119
      %p126 = scmp.eq.s32.totalorder %s17, 3
      %p127 = por %p125, %p126
      %p128 = scmp.ne.s32.totalorder %s120, %s123
      %p129 = scmp.eq.s32.totalorder %s17, 0
      %p130 = por %p128, %p129
      %p131 = scmp.ne.s32.totalorder %s120, %s123
      %p132 = scmp.eq.s32.totalorder %s22, 3
      %p133 = por %p131, %p132
      %p134 = scmp.ne.s32.totalorder %s123, %s124
      %p135 = scmp.eq.s32.totalorder %s22, 0
      %p136 = por %p134, %p135
      %p137 = scmp.ne.s32.totalorder %s123, %s124
      %p138 = scmp.eq.s32.totalorder %s23, 3
      %p139 = por %p137, %p138
      %p141 = scmp.ne.s32.totalorder %s124, %s140
      %p142 = scmp.eq.s32.totalorder %s23, 0
      %p143 = por %p141, %p142
      %s144 = ssub.s32 %s24, %s43
      %s145 = ssub.s32 %s26, %s35
      %s146 = sor.u32 %s144, %s145
      %s147 = ssub.s32 %s25, %s39
      %s148 = sor.u32 %s146, %s147
      %p149 = scmp.eq.s32.totalorder %s148, 0
      %s151 = sadd.s32 %s150, 1
      %s152 = scalar_select %p149, %s150, %s151
      %p155 = pneg %p149
      %p156 = scmp.eq.s32.totalorder %s17, 3
      %p157 = por %p155, %p156
      %p158 = scmp.ne.s32.totalorder %s150, %s153
      %p159 = scmp.eq.s32.totalorder %s17, 0
      %p160 = por %p158, %p159
      %p161 = scmp.ne.s32.totalorder %s150, %s153
      %p162 = scmp.eq.s32.totalorder %s22, 3
      %p163 = por %p161, %p162
      %p164 = scmp.ne.s32.totalorder %s153, %s154
      %p165 = scmp.eq.s32.totalorder %s22, 0
      %p166 = por %p164, %p165
      %p167 = scmp.ne.s32.totalorder %s153, %s154
      %p168 = scmp.eq.s32.totalorder %s23, 3
      %p169 = por %p167, %p168
      %p171 = scmp.ne.s32.totalorder %s154, %s170
      %p172 = scmp.eq.s32.totalorder %s23, 0
      %p173 = por %p171, %p172
      %p174 = scmp.le.s32.totalorder 1, %s17
      %p175 = scmp.lt.s32.totalorder %s17, 5
      %p176 = pnand %p174, %p175
      %p177 = pneg %p176
      // Predicated region
      $region9: #{tpu_custom_call.1} parent=5 // pred_check
        _
      $region10: #{tpu_custom_call.1} parent=5 // pred_check_branch
        %179 = sbr.rel (%p176) target = $region12
      $region11: #{tpu_custom_call.1} parent=5 // pred_region
        %s180 = ssub.s32 %s17, 1
        // Predicated region
        $region13: #{tpu_custom_call.1} parent=11 // pred_check
          %p181 = pneg %p85
        $region14: #{tpu_custom_call.1} parent=11 // pred_check_branch
          %183 = sbr.rel (%p181) target = $region16
        $region15: #{tpu_custom_call.1} parent=11 // pred_region
          _
        $region16: #{tpu_custom_call.1} parent=11 // pred_fallthru
          _
        // Predicated region
        $region17: #{tpu_custom_call.1} parent=11 // pred_check
          %p184 = pneg %p106
        $region18: #{tpu_custom_call.1} parent=11 // pred_check_branch
          %186 = sbr.rel (%p184) target = $region20
        $region19: #{tpu_custom_call.1} parent=11 // pred_region
          _
        $region20: #{tpu_custom_call.1} parent=11 // pred_fallthru
          _
      $region12: #{tpu_custom_call.1} parent=5 // pred_fallthru
        _
      %p187 = scmp.lt.s32.totalorder %s17, 4
      // Predicated region
      $region21: #{tpu_custom_call.1} parent=5 // pred_check
        %p188 = pneg %p187
      $region22: #{tpu_custom_call.1} parent=5 // pred_check_branch
        %190 = sbr.rel (%p188) target = $region24
      $region23: #{tpu_custom_call.1} parent=5 // pred_region
        // Predicated region
        $region25: #{tpu_custom_call.1} parent=23 // pred_check
          %p191 = pneg %p58
        $region26: #{tpu_custom_call.1} parent=23 // pred_check_branch
          %193 = sbr.rel (%p191) target = $region28
        $region27: #{tpu_custom_call.1} parent=23 // pred_region
          %s194 = smul.u32 2, %s25
          %p195 = scmp.lt.s32.totalorder %s24, 1
          %s196 = scalar_select %p195, %s24, 1
          %p197 = scmp.lt.s32.totalorder %s194, 1
          %s198 = scalar_select %p197, %s194, 1
          %s199 = smul.addr %s196, 2
          %s200 = sadd.s32 %s198, %s199
          %s201 = smul.addr %s200, 8
          %s202 = scalar_lea.vmem %s0, %s201
          %s203 = smul.u32 2, %s25
        $region28: #{tpu_custom_call.1} parent=23 // pred_fallthru
          _
      $region24: #{tpu_custom_call.1} parent=5 // pred_fallthru
        _
      %p204 = scmp.le.s32.totalorder 1, %s17
      %p205 = scmp.lt.s32.totalorder %s17, 5
      %p206 = pnand %p204, %p205
      %p207 = pneg %p206
      // Predicated region
      $region29: #{tpu_custom_call.1} parent=5 // pred_check
        _
      $region30: #{tpu_custom_call.1} parent=5 // pred_check_branch
        %209 = sbr.rel (%p206) target = $region32
      $region31: #{tpu_custom_call.1} parent=5 // pred_region
        %s210 = ssub.s32 %s17, 1
        %s211 = smul.u32 2, %s28
        %p212 = scmp.lt.s32.totalorder %s27, 1
        %s213 = scalar_select %p212, %s27, 1
        %p214 = scmp.lt.s32.totalorder %s211, 1
        %s215 = scalar_select %p214, %s211, 1
        %s216 = smul.addr %s213, 2
        %s217 = sadd.s32 %s215, %s216
        %s218 = smul.addr %s217, 8
        %s219 = scalar_lea.vmem %s0, %s218
        %p220 = pneg %p64
        %p221 = pneg %p61
        %p222 = pneg %p85
        %p223 = pneg %p82
        %p224 = pneg %p106
        %p225 = pneg %p103
        %p226 = pneg %p136
        %p227 = pneg %p133
        %s228 = sand.u32 %s123, 1
        %s229 = scalar_lea.sflag [#allocation3], %s228
        %s230 = sand.u32 %s123, 1
        %s231 = smul.addr %s230, 16
        %s232 = scalar_lea.vmem [#allocation2], %s231
        %p233 = pneg %p166
        %p234 = pneg %p163
        %s235 = sand.u32 %s153, 1
        %s236 = scalar_lea.sflag [#allocation5], %s235
        %s237 = sand.u32 %s153, 1
        %s238 = smul.addr %s237, 16
        %s239 = scalar_lea.vmem [#allocation4], %s238
        %s240 = smul.u32 2, %s28
        %p241 = scmp.lt.s32.totalorder %s27, 1
        %s242 = scalar_select %p241, %s27, 1
        %p243 = scmp.lt.s32.totalorder %s240, 1
        %s244 = scalar_select %p243, %s240, 1
        %s245 = smul.addr %s242, 2
        %s246 = sadd.s32 %s244, %s245
        %s247 = smul.addr %s246, 8
        %s248 = scalar_lea.vmem %s0, %s247
        %s249 = smul.u32 2, %s28
        %s250 = smul.u32 2, %s28
        %s251 = smul.u32 2, %s28
        %v252 = vld [vmem:[%s248] sm:$0xff]
        %v253 = vld [vmem:[%s248 + $0x8] sm:$0xff]
        %s254 = smul.u32 %s29, 48
        %s255 = scalar_lea.vmem %s1, %s254
        %v256 = vld [vmem:[%s255] sm:$0xff]
        %v257 = vld [vmem:[%s255 + $0x8] sm:$0xff]
        %v258 = vld [vmem:[%s255 + $0x10] sm:$0xff]
        %v259 = vld [vmem:[%s255 + $0x18] sm:$0xff]
        %v260 = vld [vmem:[%s255 + $0x20] sm:$0xff]
        %v261 = vld [vmem:[%s255 + $0x28] sm:$0xff]
        %vm262 = vcmask 392192
        %v264 = vsel %vm262, %v252, 0
        %v267 = vsel %vm262, %v253, 0
        %269 = vmatpush.msra.mxu0 0.0
        %270 = vmatpush.msra.mxu0 0.0
        %271 = vmatpush.msra.mxu0 0.0
        %272 = vmatpush.msra.mxu0 0.0
        %273 = vmatpush.msra.mxu0 0.0
        %274 = vmatpush.msra.mxu0 0.0
        %275 = vmatpush.msra.mxu0 0.0
        %276 = vmatpush.msra.mxu0 0.0
        %277 = vmatpush.msra.mxu0 0.0
        %278 = vmatpush.msra.mxu0 0.0
        %279 = vmatpush.msra.mxu0 %v261
        %280 = vmatpush.msra.mxu0 %v260
        %281 = vmatpush.msra.mxu0 %v259
        %282 = vmatpush.msra.mxu0 %v258
        %283 = vmatpush.msra.mxu0 %v257
        %284 = vmatpush.msra.mxu0 %v256
        %285 = vmatmul.f32.gmra.mxu0 %v264
        %v286 = vpop.f32.mrf.mxu0
        %v287 = vadd.f32 0.0, %v286
        %288 = vmatmul.f32.gmra.mxu0 %v267
        %v289 = vpop.f32.mrf.mxu0
        %v290 = vadd.f32 0.0, %v289
        %291 = vdwg.mxu0
        %vm292 = vcmask 130048
        %293 = vst.msk [vmem:[%s232] sm:$0xff] %vm292, %v287
        %294 = vst.msk [vmem:[%s232 + $0x8] sm:$0xff] %vm292, %v290
        %s295 = scalar_lea.vmem %s2, %s254
        %v296 = vld [vmem:[%s295] sm:$0xff]
        %v297 = vld [vmem:[%s295 + $0x8] sm:$0xff]
        %v298 = vld [vmem:[%s295 + $0x10] sm:$0xff]
        %v299 = vld [vmem:[%s295 + $0x18] sm:$0xff]
        %v300 = vld [vmem:[%s295 + $0x20] sm:$0xff]
        %v301 = vld [vmem:[%s295 + $0x28] sm:$0xff]
        %302 = vmatpush.msra.mxu0 0.0
        %303 = vmatpush.msra.mxu0 0.0
        %304 = vmatpush.msra.mxu0 0.0
        %305 = vmatpush.msra.mxu0 0.0
        %306 = vmatpush.msra.mxu0 0.0
        %307 = vmatpush.msra.mxu0 0.0
        %308 = vmatpush.msra.mxu0 0.0
        %309 = vmatpush.msra.mxu0 0.0
        %310 = vmatpush.msra.mxu0 0.0
        %311 = vmatpush.msra.mxu0 0.0
        %312 = vmatpush.msra.mxu0 %v301
        %313 = vmatpush.msra.mxu0 %v300
        %314 = vmatpush.msra.mxu0 %v299
        %315 = vmatpush.msra.mxu0 %v298
        %316 = vmatpush.msra.mxu0 %v297
        %317 = vmatpush.msra.mxu0 %v296
        %318 = vmatmul.f32.gmra.mxu0 %v264
        %v319 = vpop.f32.mrf.mxu0
        %v320 = vadd.f32 0.0, %v319
        %321 = vmatmul.f32.gmra.mxu0 %v267
        %v322 = vpop.f32.mrf.mxu0
        %v323 = vadd.f32 0.0, %v322
        %324 = vdwg.mxu0
        %325 = vst.msk [vmem:[%s239] sm:$0xff] %vm292, %v320
        %326 = vst.msk [vmem:[%s239 + $0x8] sm:$0xff] %vm292, %v323
        %s327 = sand.u32 %s123, 1
        %s328 = scalar_lea.sflag [#allocation3], %s327
        %s329 = sand.u32 %s123, 1
        %s330 = smul.addr %s329, 16
        %s331 = scalar_lea.vmem [#allocation2], %s330
        %s332 = sand.u32 %s153, 1
        %s333 = scalar_lea.sflag [#allocation5], %s332
        %s334 = sand.u32 %s153, 1
        %s335 = smul.addr %s334, 16
        %s336 = scalar_lea.vmem [#allocation4], %s335
        // Predicated region
        $region33: #{tpu_custom_call.1} parent=31 // pred_check
          %p337 = pneg %p133
        $region34: #{tpu_custom_call.1} parent=31 // pred_check_branch
          %339 = sbr.rel (%p337) target = $region36
        $region35: #{tpu_custom_call.1} parent=31 // pred_region
          %s340 = smul.u32 2, %s28
          %342 = vsyncadd %s328, 0
          %s343 = smul.addr %s29, 2
          %s344 = sadd.s32 %s340, %s343
          %s345 = smul.addr %s27, 4
          %s346 = sadd.s32 %s344, %s345
          %s347 = smul.addr %s346, 8
          %s348 = scalar_lea.hbm %s3, %s347
          %s349 = sshll.u32 %s331, 4
          %s350 = int_to_ptr.vmem [resolvable:$true] %s349
          %s351 = sshll.u32 %s348, 4
          %s352 = int_to_ptr.hbm [resolvable:$true] %s351
          %357 = dma.vmem_to_hbm [thread:$0]  %s350, 256, %s352, %s328, 128, 128, 8
        $region36: #{tpu_custom_call.1} parent=31 // pred_fallthru
          _
        // Predicated region
        $region37: #{tpu_custom_call.1} parent=31 // pred_check
          %p358 = pneg %p163
        $region38: #{tpu_custom_call.1} parent=31 // pred_check_branch
          %360 = sbr.rel (%p358) target = $region40
        $region39: #{tpu_custom_call.1} parent=31 // pred_region
          %s361 = smul.u32 2, %s28
          %363 = vsyncadd %s333, 0
          %s364 = smul.addr %s29, 2
          %s365 = sadd.s32 %s361, %s364
          %s366 = smul.addr %s27, 4
          %s367 = sadd.s32 %s365, %s366
          %s368 = smul.addr %s367, 8
          %s369 = scalar_lea.hbm %s4, %s368
          %s370 = sshll.u32 %s336, 4
          %s371 = int_to_ptr.vmem [resolvable:$true] %s370
          %s372 = sshll.u32 %s369, 4
          %s373 = int_to_ptr.hbm [resolvable:$true] %s372
          %378 = dma.vmem_to_hbm [thread:$0]  %s371, 256, %s373, %s333, 128, 128, 8
        $region40: #{tpu_custom_call.1} parent=31 // pred_fallthru
          _
      $region32: #{tpu_custom_call.1} parent=5 // pred_fallthru
        _
      %p379 = scmp.le.s32.totalorder 2, %s17
      // Predicated region
      $region41: #{tpu_custom_call.1} parent=5 // pred_check
        %p380 = pneg %p379
      $region42: #{tpu_custom_call.1} parent=5 // pred_check_branch
        %382 = sbr.rel (%p380) target = $region44
      $region43: #{tpu_custom_call.1} parent=5 // pred_region
        %s383 = ssub.s32 %s17, 2
        // Predicated region
        $region45: #{tpu_custom_call.1} parent=43 // pred_check
          %p384 = pneg %p139
        $region46: #{tpu_custom_call.1} parent=43 // pred_check_branch
          %386 = sbr.rel (%p384) target = $region48
        $region47: #{tpu_custom_call.1} parent=43 // pred_region
          %s387 = sand.u32 %s124, 1
          %s388 = scalar_lea.sflag [#allocation3], %s387
          %s389 = sand.u32 %s124, 1
          %s390 = smul.addr %s389, 16
          %s391 = scalar_lea.vmem [#allocation2], %s390
          %393 = dma.done %s388, 256
        $region48: #{tpu_custom_call.1} parent=43 // pred_fallthru
          _
        // Predicated region
        $region49: #{tpu_custom_call.1} parent=43 // pred_check
          %p394 = pneg %p169
        $region50: #{tpu_custom_call.1} parent=43 // pred_check_branch
          %396 = sbr.rel (%p394) target = $region52
        $region51: #{tpu_custom_call.1} parent=43 // pred_region
          %s397 = sand.u32 %s154, 1
          %s398 = scalar_lea.sflag [#allocation5], %s397
          %s399 = sand.u32 %s154, 1
          %s400 = smul.addr %s399, 16
          %s401 = scalar_lea.vmem [#allocation4], %s400
          %403 = dma.done %s398, 256
        $region52: #{tpu_custom_call.1} parent=43 // pred_fallthru
          _
      $region44: #{tpu_custom_call.1} parent=5 // pred_fallthru
        _
    $region6: #{tpu_custom_call.1} parent=1 // loop_footer
      %s21 = sadd.s32 1, %s17
    $region7: #{tpu_custom_call.1} parent=1 // loop_footer_branch
      %16 = sbr.rel target = $region3
    $region8: #{tpu_custom_call.1} parent=1 // loop_exit
      _
    %404 = vsyncpa [#allocation3], 1
    %s405 = scalar_lea.sflag [#allocation3], 1
    %406 = vsyncpa %s405, 1
    %407 = vsyncpa [#allocation5], 1
    %s408 = scalar_lea.sflag [#allocation5], 1
    %409 = vsyncpa %s408, 1

</llo_original>
